<compile_context>
chip_gen: v7x
topology: tpu7x:2x2x1
jax: 0.10.0
libtpu: 0.0.40
codegen_flags: <defaults>
</compile_context>

<pallas_src>
import jax
import jax.numpy as jnp
from jax.experimental import pallas as pl
from jax.experimental.pallas import tpu as pltpu


def _linear_kernel(x_ref, w_ref, b_ref, o_ref):
    # y = x @ W^T + b, with in_f = out_f = 2, computed entirely on the VPU.
    x = x_ref[...]                       # (B, 2) f32 — fits in one vreg tile
    x0 = x[:, 0:1]                       # (B, 1)
    x1 = x[:, 1:2]                       # (B, 1)

    # Scalar weight / bias reads from SMEM (hoisted once, broadcast on the VPU).
    w00 = w_ref[0, 0]
    w01 = w_ref[0, 1]
    w10 = w_ref[1, 0]
    w11 = w_ref[1, 1]
    b0 = b_ref[0]
    b1 = b_ref[1]

    y0 = x0 * w00 + x1 * w01 + b0        # (B, 1)  -> output column 0
    y1 = x0 * w10 + x1 * w11 + b1        # (B, 1)  -> output column 1
    o_ref[...] = jnp.concatenate([y0, y1], axis=-1).astype(o_ref.dtype)


def linear_forward(x, weight, bias):
    """x: (B, 2) f32; weight: (2, 2) f32 (out, in); bias: (2,) f32."""
    B, in_f = x.shape
    out_f = weight.shape[0]
    assert in_f == 2 and out_f == 2, "kernel is specialized for Linear(2, 2)"

    flops = 2 * B * in_f * out_f
    bytes_accessed = 4 * (x.size + weight.size + bias.size + B * out_f)

    return pl.pallas_call(
        _linear_kernel,
        out_shape=jax.ShapeDtypeStruct((B, out_f), x.dtype),
        # Single invocation (no grid): whole arrays as blocks; tiny shapes are
        # exempt from the (8,128) block divisibility rule.
        in_specs=[
            pl.BlockSpec(memory_space=pltpu.MemorySpace.VMEM),   # x
            pl.BlockSpec(memory_space=pltpu.MemorySpace.SMEM),   # weight (4 scalars)
            pl.BlockSpec(memory_space=pltpu.MemorySpace.SMEM),   # bias   (2 scalars)
        ],
        out_specs=pl.BlockSpec(memory_space=pltpu.MemorySpace.VMEM),
        cost_estimate=pl.CostEstimate(
            flops=flops, transcendentals=0, bytes_accessed=bytes_accessed),
    )(x, weight, bias)


if __name__ == "__main__":
    key = jax.random.PRNGKey(0)
    k_x, k_w, k_b = jax.random.split(key, 3)

    B, in_f, out_f = 8, 2, 2

    # Deterministic parameter init mimicking torch.nn.Linear defaults
    # (uniform in [-1/sqrt(in_f), 1/sqrt(in_f)]).
    bound = 1.0 / (in_f ** 0.5)
    weight = jax.random.uniform(k_w, (out_f, in_f), jnp.float32, -bound, bound)
    bias = jax.random.uniform(k_b, (out_f,), jnp.float32, -bound, bound)

    x = jax.random.normal(k_x, (B, in_f), jnp.float32)

    y = linear_forward(x, weight, bias)
    jax.block_until_ready(y)

    # Reference check in plain JAX (dropout output is dead code -> return v1).
    y_ref = x @ weight.T + bias
    assert jnp.allclose(y, y_ref, atol=1e-5, rtol=1e-5), "mismatch vs reference"

    print("KERNEL_OK")
</pallas_src>

<mosaic_0001>
module attributes {stable_mosaic.version = 11 : i64} {
  func.func @_linear_kernel(%arg0: memref<8x2xf32, #tpu.memory_space<vmem>>, %arg1: memref<2x2xf32, #tpu.memory_space<smem>>, %arg2: memref<2xf32, #tpu.memory_space<smem>>, %arg3: memref<8x2xf32, #tpu.memory_space<vmem>>) attributes {dimension_semantics = [], scalar_prefetch = 0 : i64, scratch_operands = 0 : i64, tpu.core_type = #tpu.core_type<tc>} {
    %c0 = arith.constant 0 : index
    %c0_0 = arith.constant 0 : index
    %0 = vector.load %arg0[%c0, %c0_0] : memref<8x2xf32, #tpu.memory_space<vmem>>, vector<8x2xf32>
    %1 = vector.extract_strided_slice %0 {offsets = [0, 0], sizes = [8, 1], strides = [1, 1]} : vector<8x2xf32> to vector<8x1xf32>
    %2 = vector.extract_strided_slice %0 {offsets = [0, 1], sizes = [8, 1], strides = [1, 1]} : vector<8x2xf32> to vector<8x1xf32>
    %c0_1 = arith.constant 0 : index
    %c0_2 = arith.constant 0 : index
    %3 = memref.load %arg1[%c0_1, %c0_2] : memref<2x2xf32, #tpu.memory_space<smem>>
    %c0_3 = arith.constant 0 : index
    %c1 = arith.constant 1 : index
    %4 = memref.load %arg1[%c0_3, %c1] : memref<2x2xf32, #tpu.memory_space<smem>>
    %c1_4 = arith.constant 1 : index
    %c0_5 = arith.constant 0 : index
    %5 = memref.load %arg1[%c1_4, %c0_5] : memref<2x2xf32, #tpu.memory_space<smem>>
    %c1_6 = arith.constant 1 : index
    %c1_7 = arith.constant 1 : index
    %6 = memref.load %arg1[%c1_6, %c1_7] : memref<2x2xf32, #tpu.memory_space<smem>>
    %c0_8 = arith.constant 0 : index
    %7 = memref.load %arg2[%c0_8] : memref<2xf32, #tpu.memory_space<smem>>
    %c1_9 = arith.constant 1 : index
    %8 = memref.load %arg2[%c1_9] : memref<2xf32, #tpu.memory_space<smem>>
    %9 = vector.broadcast %3 : f32 to vector<8x1xf32>
    %10 = arith.mulf %1, %9 : vector<8x1xf32>
    %11 = vector.broadcast %4 : f32 to vector<8x1xf32>
    %12 = arith.mulf %2, %11 : vector<8x1xf32>
    %13 = arith.addf %10, %12 : vector<8x1xf32>
    %14 = vector.broadcast %7 : f32 to vector<8x1xf32>
    %15 = arith.addf %13, %14 : vector<8x1xf32>
    %16 = vector.broadcast %5 : f32 to vector<8x1xf32>
    %17 = arith.mulf %1, %16 : vector<8x1xf32>
    %18 = vector.broadcast %6 : f32 to vector<8x1xf32>
    %19 = arith.mulf %2, %18 : vector<8x1xf32>
    %20 = arith.addf %17, %19 : vector<8x1xf32>
    %21 = vector.broadcast %8 : f32 to vector<8x1xf32>
    %22 = arith.addf %20, %21 : vector<8x1xf32>
    %23 = tpu.concatenate %15, %22 in 1 : vector<8x1xf32>, vector<8x1xf32> -> vector<8x2xf32>
    %c0_10 = arith.constant 0 : index
    %c0_11 = arith.constant 0 : index
    %24 = vector.load %arg3[%c0_10, %c0_11] : memref<8x2xf32, #tpu.memory_space<vmem>>, vector<8x2xf32>
    tpu.vector_store %arg3[%c0_10, %c0_11], %23 {strides = array<i32>} : memref<8x2xf32, #tpu.memory_space<vmem>>, vector<8x2xf32>,
    return
  }
}

</mosaic_0001>

<llo_original>
// kernel: tpu_custom_call.1
$region0: #{tpu_custom_call.1}
  #allocation0 [shape = 'u32[]', space=smem, size = 0x4, offset = 0x4, fixed_abs, tag = 'smem constant byte address 0x4 - core index']
  #allocation1 [shape = 'u32[144,128]{1,0:T(1,128)}', space=vmem, size = 0x12000, scoped, tag = 'internal scratch']
  %s0 = inlined_call_operand.vmem [shape: f32[8,2], index: 0, kind: input, shape index: {}]
  %s1 = inlined_call_operand.vmem [shape: f32[2,2], index: 1, kind: input, shape index: {}]
  %s2 = inlined_call_operand.vmem [shape: f32[2], index: 2, kind: input, shape index: {}]
  %s3 = inlined_call_operand.vmem [shape: f32[8,2], index: 3, kind: output, shape index: {}]
  %s4 = sld [smem:[#allocation0]]
  $region30: #{tpu_custom_call.1} parent=0
    _
  %s6 = ssub.s32 1, %s4
  %s7 = scalar_select 0, %s6, %s4
  $region1: #{tpu_custom_call.1} parent=0
    #allocation2 [shape = 'u8[1024]{0}', space=smem, size = 0x400, scoped, tag = 'input window, operand 1, single buffered']
    #allocation3 [shape = 's32[1]{0}', space=sflag, size = 0x4, scoped, tag = 'scoped memory for tpu_custom_call.1']
    #allocation4 [shape = 'u8[512]{0}', space=smem, size = 0x200, scoped, tag = 'input window, operand 2, single buffered']
    #allocation5 [shape = 's32[1]{0}', space=sflag, size = 0x4, scoped, tag = 'scoped memory for tpu_custom_call.1']
    %8 = vsyncpa [#allocation3], 0
    %9 = vsyncpa [#allocation5], 0
    // Predicated region
    $region2: #{tpu_custom_call.1} parent=1 // pred_check
      _
    $region3: #{tpu_custom_call.1} parent=1 // pred_check_branch
      %11 = sbr.rel (0) target = $region5
    $region4: #{tpu_custom_call.1} parent=1 // pred_region
      _
    $region5: #{tpu_custom_call.1} parent=1 // pred_fallthru
      _
    // Predicated region
    $region6: #{tpu_custom_call.1} parent=1 // pred_check
      _
    $region7: #{tpu_custom_call.1} parent=1 // pred_check_branch
      %13 = sbr.rel (0) target = $region9
    $region8: #{tpu_custom_call.1} parent=1 // pred_region
      %s15 = ssub.s32 32, 32
      %16 = vsyncadd [#allocation3], %s15
      %s18 = sshll.u32 %s1, 4
      %s19 = int_to_ptr.vmem [resolvable:$true] %s18
      %21 = dma.vmem_to_smem %s19, 32, [#allocation2], [#allocation3]
    $region9: #{tpu_custom_call.1} parent=1 // pred_fallthru
      _
    // Predicated region
    $region10: #{tpu_custom_call.1} parent=1 // pred_check
      _
    $region11: #{tpu_custom_call.1} parent=1 // pred_check_branch
      %23 = sbr.rel (0) target = $region13
    $region12: #{tpu_custom_call.1} parent=1 // pred_region
      %s25 = ssub.s32 16, 16
      %26 = vsyncadd [#allocation5], %s25
      %s28 = sshll.u32 %s2, 4
      %s29 = int_to_ptr.vmem [resolvable:$true] %s28
      %31 = dma.vmem_to_smem %s29, 16, [#allocation4], [#allocation5]
    $region13: #{tpu_custom_call.1} parent=1 // pred_fallthru
      _
    // Predicated region
    $region14: #{tpu_custom_call.1} parent=1 // pred_check
      _
    $region15: #{tpu_custom_call.1} parent=1 // pred_check_branch
      %33 = sbr.rel (0) target = $region17
    $region16: #{tpu_custom_call.1} parent=1 // pred_region
      %34 = dma.done [#allocation3], 32
    $region17: #{tpu_custom_call.1} parent=1 // pred_fallthru
      _
    // Predicated region
    $region18: #{tpu_custom_call.1} parent=1 // pred_check
      _
    $region19: #{tpu_custom_call.1} parent=1 // pred_check_branch
      %36 = sbr.rel (0) target = $region21
    $region20: #{tpu_custom_call.1} parent=1 // pred_region
      %37 = dma.done [#allocation5], 16
    $region21: #{tpu_custom_call.1} parent=1 // pred_fallthru
      _
    %38 = sfence
    %v39 = vld [vmem:[%s0] sm:$0xff]
    %s40 = sld [smem:[#allocation2]]
    %s41 = sld [smem:[#allocation2 + $0x1]]
    %s42 = sld [smem:[#allocation2 + $0x80]]
    %s43 = sld [smem:[#allocation2 + $0x81]]
    %s44 = sld [smem:[#allocation4]]
    %s45 = sld [smem:[#allocation4 + $0x1]]
    %v46 = vstv %s40
    %v47 = vmul.f32 %v39, %v46
    %v48 = vstv %s41
    %v49 = vmul.f32 %v39, %v48
    %51 = vrot.lane.b32.xlu0 %v49, 127
    %v52 = vpop.permute.xlu0 %51
    %v54 = vadd.f32 %v47, %v52
    %v55 = vstv %s44
    %v56 = vadd.f32 %v54, %v55
    %v57 = vstv %s42
    %v58 = vmul.f32 %v39, %v57
    %v59 = vstv %s43
    %v60 = vmul.f32 %v39, %v59
    %62 = vrot.lane.b32.xlu0 %v60, 127
    %v63 = vpop.permute.xlu0 %62
    %v65 = vadd.f32 %v58, %v63
    %v66 = vstv %s45
    %v67 = vadd.f32 %v65, %v66
    %69 = vrot.lane.b32.xlu0 %v67, 1
    %v70 = vpop.permute.xlu0 %69
    %vm72 = vcmask 7168
    %v73 = vsel %vm72, %v56, %v70
    %vm74 = vcmask 15360
    %75 = vst.msk [vmem:[%s3] sm:$0xff] %vm74, %v73
    // Predicated region
    $region22: #{tpu_custom_call.1} parent=1 // pred_check
      _
    $region23: #{tpu_custom_call.1} parent=1 // pred_check_branch
      %77 = sbr.rel (0) target = $region25
    $region24: #{tpu_custom_call.1} parent=1 // pred_region
      _
    $region25: #{tpu_custom_call.1} parent=1 // pred_fallthru
      _
    // Predicated region
    $region26: #{tpu_custom_call.1} parent=1 // pred_check
      _
    $region27: #{tpu_custom_call.1} parent=1 // pred_check_branch
      %79 = sbr.rel (0) target = $region29
    $region28: #{tpu_custom_call.1} parent=1 // pred_region
      _
    $region29: #{tpu_custom_call.1} parent=1 // pred_fallthru
      _
    %80 = vsyncpa [#allocation3], 1
    %81 = vsyncpa [#allocation5], 1

</llo_original>
